<compile_context>
chip_gen: v7x
topology: tpu7x:2x2x1
jax: 0.10.0
libtpu: 0.0.40
codegen_flags: <defaults>
</compile_context>

<pallas_src>
import functools
import math

import jax
import jax.numpy as jnp
from jax import lax
from jax.experimental import pallas as pl
from jax.experimental.pallas import tpu as pltpu

# MXU operand / inter-layer activation dtype.  bf16 doubles MXU throughput and
# halves HBM traffic across every layer boundary; accumulation, BN statistics
# and the final output stay f32.  Set to jnp.float32 for exact-f32 conv.
MXU_DTYPE = jnp.bfloat16
ACT_DTYPE = MXU_DTYPE
# Channel padding: 16 keeps bf16 sublane packing (16,128) exactly aligned.
CH_ALIGN = 16 if MXU_DTYPE == jnp.bfloat16 else 8
# Lane width of the per-tile BN-stats output (>=128 -> unmasked vst).
STATS_LANES = 128
# Per-pallas_call VMEM budget: <=48 MiB leaves headroom on v7x (64 MiB phys)
# and is comfortably below v5e/v6e's 128 MiB.
VMEM_LIMIT = 48 * 1024 * 1024
# Target lane width of one grid tile (whole images, multiple of 128); the grid
# is additionally forced to >= MIN_GRID_STEPS steps (2 per TensorCore on v7x,
# and enough steps for the double-buffered DMA pipeline to actually overlap).
TARGET_TILE_LANES = 8192
MIN_GRID_STEPS = 4


def _round_up(x, m):
    return (x + m - 1) // m * m


# ----------------------------------------------------------------------------
# pltpu.roll sign-convention probe (tiny one-off kernel, run eagerly, cached).
# Keeps the im2col shifts correct regardless of whether roll follows the
# np.roll convention (out[i] = x[i - shift]) or its mirror.
# ----------------------------------------------------------------------------
_ROLL_SIGN = []


def _get_roll_sign():
    if _ROLL_SIGN:
        return _ROLL_SIGN[0]

    def k(x_ref, o_ref):
        o_ref[...] = pltpu.roll(x_ref[...], shift=1, axis=1)

    x = jnp.tile(jnp.arange(128, dtype=jnp.float32)[None, :], (8, 1))
    out = pl.pallas_call(
        k, out_shape=jax.ShapeDtypeStruct((8, 128), jnp.float32))(x)
    if bool(jnp.all(out == jnp.roll(x, 1, axis=1))):
        sign = 1
    elif bool(jnp.all(out == jnp.roll(x, -1, axis=1))):
        sign = -1
    else:
        raise RuntimeError("unexpected pltpu.roll semantics")
    _ROLL_SIGN.append(sign)
    return sign


# ----------------------------------------------------------------------------
# One fused layer kernel:
#   [prev-layer BN-scale + ReLU (+ residual add)] -> bf16 cast -> im2col via
#   XLU lane rolls + boundary masks -> single MXU matmul -> bf16 y + BN partials
#   (+ optional bf16 post-activation output used as the next residual source).
# ----------------------------------------------------------------------------
def _layer_kernel(*refs, ksize, H, W, pre_act, add_res, emit_act, want_stats,
                  roll_sign):
    it = iter(refs)
    scale_ref = next(it) if pre_act else None      # (Cin_pad, 1)      f32
    x_ref = next(it)                               # (Cin_pad, TILE_P) bf16
    res_ref = next(it) if add_res else None        # (Cin_pad, TILE_P) bf16
    w_ref = next(it)                               # (Cout_pad, K*K*Cin_pad) bf16
    y_ref = next(it)                               # (Cout_pad, TILE_P)
    act_ref = next(it) if emit_act else None       # (Cin_pad, TILE_P) bf16
    stats_ref = next(it) if want_stats else None   # (1, Cout_pad, STATS_LANES)

    cin_p, tile_p = x_ref.shape
    p = ksize // 2

    x = x_ref[...]
    if pre_act:    # previous layer's BN scale + ReLU (+ residual), fused
        xf = jnp.maximum(x.astype(jnp.float32) * scale_ref[...], 0.0)
        if add_res:
            xf = xf + res_ref[...].astype(jnp.float32)
        x = xf.astype(w_ref.dtype)
    else:
        x = x.astype(w_ref.dtype)
    if emit_act:   # bf16 post-activation input == next layer's residual source
        act_ref[...] = x.astype(act_ref.dtype)

    # Per-position (row, col) coordinates inside each H x W image.  Tiles are
    # aligned to image boundaries, so in-tile indices decompose the same way.
    idx = lax.broadcasted_iota(jnp.int32, (1, tile_p), 1)
    row = (idx // W) % H
    col = idx % W

    # im2col via XLU lane rotations + boundary masks (== 'same' zero padding
    # and no cross-image leakage).  Taps stay bf16 -> half the roll/select work.
    taps = []
    for dy in range(ksize):
        oy = dy - p
        for dx in range(ksize):
            ox = dx - p
            s = oy * W + ox                      # tap value = x[:, i + s]
            if s == 0:
                t = x
            else:
                t = pltpu.roll(x, shift=(-roll_sign * s) % tile_p, axis=1)
            conds = []
            if oy < 0:
                conds.append(row >= -oy)
            if oy > 0:
                conds.append(row < H - oy)
            if ox < 0:
                conds.append(col >= -ox)
            if ox > 0:
                conds.append(col < W - ox)
            if conds:
                m = functools.reduce(lambda a, b: a & b, conds)
                t = jnp.where(m, t, jnp.zeros_like(t))
            taps.append(t)
    im2col = jnp.concatenate(taps, axis=0)        # (K*K*Cin_pad, TILE_P) bf16

    y = jnp.dot(w_ref[...], im2col, preferred_element_type=jnp.float32)

    if want_stats:  # BN partials from the f32 accumulator, before the bf16 cast
        s1 = jnp.sum(y, axis=1, keepdims=True)
        s2 = jnp.sum(y * y, axis=1, keepdims=True)
        zeros = jnp.zeros((y.shape[0], STATS_LANES - 2), jnp.float32)
        stats_ref[0] = jnp.concatenate([s1, s2, zeros], axis=1)

    y_ref[...] = y.astype(y_ref.dtype)


def _conv_layer(x, scale, res, layer, *, H, W, tile_p, pre_act, add_res,
                emit_act, want_stats, out_dtype):
    cin_p, p_pad = x.shape
    cout_p = layer["cout_pad"]
    kkc = layer["w_mat"].shape[1]
    num_tiles = p_pad // tile_p

    in_specs, args = [], []
    if pre_act:
        in_specs.append(pl.BlockSpec((cin_p, 1), lambda i: (0, 0)))
        args.append(scale)
    in_specs.append(pl.BlockSpec((cin_p, tile_p), lambda i: (0, i)))
    args.append(x)
    if add_res:
        in_specs.append(pl.BlockSpec((cin_p, tile_p), lambda i: (0, i)))
        args.append(res)
    in_specs.append(pl.BlockSpec((cout_p, kkc), lambda i: (0, 0)))
    args.append(layer["w_mat"])

    out_specs = [pl.BlockSpec((cout_p, tile_p), lambda i: (0, i))]
    out_shape = [jax.ShapeDtypeStruct((cout_p, p_pad), out_dtype)]
    if emit_act:
        out_specs.append(pl.BlockSpec((cin_p, tile_p), lambda i: (0, i)))
        out_shape.append(jax.ShapeDtypeStruct((cin_p, p_pad), ACT_DTYPE))
    if want_stats:
        out_specs.append(
            pl.BlockSpec((1, cout_p, STATS_LANES), lambda i: (i, 0, 0)))
        out_shape.append(
            jax.ShapeDtypeStruct((num_tiles, cout_p, STATS_LANES), jnp.float32))

    kernel = functools.partial(
        _layer_kernel, ksize=layer["ksize"], H=H, W=W, pre_act=pre_act,
        add_res=add_res, emit_act=emit_act, want_stats=want_stats,
        roll_sign=_get_roll_sign())

    outs = pl.pallas_call(
        kernel,
        grid=(num_tiles,),
        in_specs=in_specs,
        out_specs=out_specs,
        out_shape=out_shape,
        compiler_params=pltpu.CompilerParams(
            dimension_semantics=("parallel",),     # megacore-shardable on v7x
            vmem_limit_bytes=VMEM_LIMIT),
    )(*args)
    if not isinstance(outs, (tuple, list)):
        outs = (outs,)
    return list(outs)


# ----------------------------------------------------------------------------
# Wrapper-side glue (all O(C) / layout plumbing).
# ----------------------------------------------------------------------------
def _bn_scale(stats, gamma_pad, count):
    """BF_BN per-channel scale = gamma * rsqrt(max(var, 1e-5)) from partials."""
    tot = jnp.sum(stats, axis=0)                 # (Cout_pad, STATS_LANES)
    mean = tot[:, 0] / count
    var = tot[:, 1] / count - mean * mean
    scale = gamma_pad * lax.rsqrt(jnp.maximum(var, 1e-5))
    return scale.reshape(-1, 1).astype(jnp.float32)


def _choose_tiling(n_imgs, p_img, target_lanes=TARGET_TILE_LANES,
                   min_grid=MIN_GRID_STEPS):
    """Whole-image tiles, lane width a multiple of 128, grid >= min_grid."""
    lcm = p_img * 128 // math.gcd(p_img, 128)
    unit = lcm // p_img                          # images per lane-aligned chunk
    imgs = _round_up(max(unit, -(-target_lanes // p_img)), unit)
    if n_imgs >= min_grid * unit:                # keep >= min_grid grid steps
        imgs = min(imgs, max(unit, (n_imgs // (min_grid * unit)) * unit))
    imgs = min(imgs, _round_up(n_imgs, unit))
    n_pad = _round_up(n_imgs, imgs)
    return imgs, n_pad


def init_net_params(key, K_size, C_in, C_hid, C_out, N_layer, residual=False,
                    batchnorm=True):
    """Deterministic synthetic params mirroring Net.__init__ shapes/flags."""
    assert K_size % 2 == 1
    chans = [C_in] + [C_hid] * (N_layer - 1) + [C_out]
    layers = []
    for j in range(N_layer):
        ci, co = chans[j], chans[j + 1]
        last = j == N_layer - 1
        key, sub = jax.random.split(key)
        fan_in = ci * K_size * K_size
        # kaiming_normal_(a=0, fan_in) for relu layers; scaled normal for last.
        std = (2.0 / fan_in) ** 0.5 if not last else (1.0 / fan_in) ** 0.5
        w = jax.random.normal(sub, (K_size, K_size, ci, co), jnp.float32) * std
        gamma = jnp.ones((co,), jnp.float32)
        cip, cop = _round_up(ci, CH_ALIGN), _round_up(co, CH_ALIGN)
        # Folded weight: (Cout_pad, K*K*Cin_pad), row-major taps, channel-minor.
        w_mat = jnp.pad(jnp.transpose(w, (3, 0, 1, 2)),
                        ((0, cop - co), (0, 0), (0, 0), (0, cip - ci)))
        w_mat = w_mat.reshape(cop, K_size * K_size * cip).astype(MXU_DTYPE)
        is_res = bool(residual) and (0 < j < N_layer - 1)
        if is_res:
            assert ci == co
        layers.append(dict(
            w=w, w_mat=w_mat, gamma=gamma,
            # gamma padded with ZEROS -> dead (padded) channels get scale 0.
            gamma_pad=jnp.pad(gamma, (0, cop - co)),
            cin=ci, cout=co, cin_pad=cip, cout_pad=cop, ksize=K_size,
            use_bn=batchnorm and not last, use_relu=not last, residual=is_res))
    return layers


def net_forward(x_ncdhw, layers):
    """x: (B, C_in, T, H, W) -> (B, C_out, T, H, W).  Train-mode Net.forward."""
    B, C_in, T, H, W = x_ncdhw.shape
    assert C_in == layers[0]["cin"]
    N = B * T
    p_img = H * W
    imgs_per_tile, n_pad = _choose_tiling(N, p_img)
    tile_p = imgs_per_tile * p_img
    p_pad = n_pad * p_img
    count = float(N * p_img)       # real elements per channel for BN statistics

    # NCDHW -> (C_pad, N_pad*H*W): channels on sublanes, flattened spatial on
    # lanes.  Zero-padded channels/images stay exactly zero through every layer
    # (zero weight rows/cols, gamma_pad=0) and drop out of the BN sums.
    a = jnp.transpose(x_ncdhw, (1, 0, 2, 3, 4)).reshape(C_in, N * p_img)
    a = jnp.pad(a, ((0, layers[0]["cin_pad"] - C_in), (0, p_pad - N * p_img)))
    a = a.astype(ACT_DTYPE)

    y_prev = a          # layer 0 input plays the role of the "previous y"
    scale = None        # None => layer 0: no prologue scale/relu
    res = None          # previous layer's residual source (bf16), if any
    for j, L in enumerate(layers):
        last = j == len(layers) - 1
        pre_act = j > 0
        add_res = pre_act and layers[j - 1]["residual"]
        outs = _conv_layer(
            y_prev, scale, res, L, H=H, W=W, tile_p=tile_p,
            pre_act=pre_act, add_res=add_res, emit_act=L["residual"],
            want_stats=L["use_bn"],
            out_dtype=jnp.float32 if last else ACT_DTYPE)
        k = 0
        y = outs[k]; k += 1
        act = None
        if L["residual"]:
            act = outs[k]; k += 1
        if not last:
            if L["use_bn"]:
                stats = outs[k]; k += 1
                scale = _bn_scale(stats, L["gamma_pad"], count)
            else:
                scale = jnp.ones((L["cout_pad"], 1), jnp.float32)
        y_prev = y
        res = act

    c_out = layers[-1]["cout"]
    out = y_prev[:c_out, :N * p_img].reshape(c_out, B, T, H, W)
    return jnp.transpose(out, (1, 0, 2, 3, 4))


# ----------------------------------------------------------------------------
# Pure-JAX reference.  Uses an independent conv (lax.conv_general_dilated) but
# mimics the kernel's rounding points (bf16 operands + bf16 activation storage,
# f32 accumulation / BN) so the comparison isolates real bugs from bf16 noise.
# ----------------------------------------------------------------------------
def ref_forward(x_ncdhw, layers):
    B, C, T, H, W = x_ncdhw.shape
    a = jnp.transpose(x_ncdhw, (0, 2, 3, 4, 1)).reshape(B * T, H, W, C)
    a = a.astype(jnp.float32)
    for j, L in enumerate(layers):
        last = j == len(layers) - 1
        a16 = a.astype(MXU_DTYPE)                    # conv operand / stored act
        y = lax.conv_general_dilated(
            a16, L["w"].astype(MXU_DTYPE), (1, 1), "SAME",
            dimension_numbers=("NHWC", "HWIO", "NHWC"),
            preferred_element_type=jnp.float32)
        if last:
            a = y
            break
        if L["use_bn"]:
            var = jnp.var(y, axis=(0, 1, 2))
            scale = L["gamma"] * lax.rsqrt(jnp.maximum(var, 1e-5))
        else:
            scale = jnp.ones((y.shape[-1],), jnp.float32)
        y = y.astype(ACT_DTYPE).astype(jnp.float32)  # bf16 HBM storage of raw y
        y = y * scale
        if L["use_relu"]:
            y = jnp.maximum(y, 0.0)
        if L["residual"]:
            y = a16.astype(jnp.float32) + y          # residual source is bf16
        a = y
    cout = a.shape[-1]
    return jnp.transpose(a.reshape(B, T, H, W, cout), (0, 4, 1, 2, 3))


if __name__ == "__main__":
    # Small shapes consistent with the module: input is (B, C_in, T, H, W).
    B, C_in, T, H, W = 4, 3, 16, 16, 16
    C_hid, C_out, N_layer, K_size = 16, 3, 4, 3

    key = jax.random.PRNGKey(0)
    key, xkey = jax.random.split(key)
    x = jax.random.normal(xkey, (B, C_in, T, H, W), jnp.float32)

    _get_roll_sign()   # probe pltpu.roll convention eagerly (outside of jit)

    for res_flag in (False, True):      # default config + residual variant
        layers = init_net_params(jax.random.PRNGKey(1), K_size, C_in, C_hid,
                                 C_out, N_layer, residual=res_flag)
        fwd = jax.jit(functools.partial(net_forward, layers=layers))
        out = jax.block_until_ready(fwd(x))
        assert out.shape == (B, C_out, T, H, W), out.shape
        ref = jax.block_until_ready(ref_forward(x, layers))
        max_err = float(jnp.max(jnp.abs(out - ref)))
        max_ref = float(jnp.max(jnp.abs(ref)))
        if MXU_DTYPE == jnp.bfloat16:
            tol = 5e-2 * max_ref + 1e-2      # bf16 noise << tol << real-bug error
        else:
            tol = 1e-3 * max_ref + 1e-4
        assert max_err < tol, (
            f"max abs err {max_err} vs tol {tol} "
            f"(max|ref|={max_ref}, residual={res_flag})")

    print("KERNEL_OK")
</pallas_src>

<mosaic_0001>
module attributes {stable_mosaic.version = 11 : i64} {
  func.func @k(%arg0: memref<8x128xf32, #tpu.memory_space<vmem>>, %arg1: memref<8x128xf32, #tpu.memory_space<vmem>>) attributes {dimension_semantics = [], scalar_prefetch = 0 : i64, scratch_operands = 0 : i64, tpu.core_type = #tpu.core_type<tc>} {
    %c0 = arith.constant 0 : index
    %c0_0 = arith.constant 0 : index
    %0 = vector.load %arg0[%c0, %c0_0] : memref<8x128xf32, #tpu.memory_space<vmem>>, vector<8x128xf32>
    %c1_i32 = arith.constant 1 : i32
    %1 = tpu.dynamic_rotate %0 by %c1_i32 dim 1 : vector<8x128xf32>, i32 -> vector<8x128xf32>
    %c0_1 = arith.constant 0 : index
    %c0_2 = arith.constant 0 : index
    %2 = vector.load %arg1[%c0_1, %c0_2] : memref<8x128xf32, #tpu.memory_space<vmem>>, vector<8x128xf32>
    tpu.vector_store %arg1[%c0_1, %c0_2], %1 {strides = array<i32>} : memref<8x128xf32, #tpu.memory_space<vmem>>, vector<8x128xf32>,
    return
  }
}

</mosaic_0001>

<llo_original>
// kernel: tpu_custom_call.1
$region0: #{tpu_custom_call.1}
  #allocation0 [shape = 'u32[]', space=smem, size = 0x4, offset = 0x4, fixed_abs, tag = 'smem constant byte address 0x4 - core index']
  #allocation1 [shape = 'u32[144,128]{1,0:T(1,128)}', space=vmem, size = 0x12000, scoped, tag = 'internal scratch']
  %s0 = inlined_call_operand.hbm [shape: f32[8,128], index: 0, kind: input, shape index: {}]
  %s1 = inlined_call_operand.hbm [shape: f32[8,128], index: 1, kind: output, shape index: {}]
  %s2 = sld [smem:[#allocation0]]
  $region18: #{tpu_custom_call.1} parent=0
    _
  %s4 = ssub.s32 1, %s2
  %s5 = scalar_select 0, %s4, %s2
  $region1: #{tpu_custom_call.1} parent=0
    #allocation2 [shape = 'u8[4096]{0}', space=vmem, size = 0x1000, scoped, tag = 'input window, operand 0, single buffered']
    #allocation3 [shape = 's32[1]{0}', space=sflag, size = 0x4, scoped, tag = 'scoped memory for tpu_custom_call.1']
    #allocation4 [shape = 's32[1]{0}', space=sflag, size = 0x4, scoped, tag = 'scoped memory for tpu_custom_call.1']
    #allocation5 [shape = 'u8[4096]{0}', space=vmem, size = 0x1000, scoped, tag = 'output window, operand 0, single buffered']
    %6 = vsyncpa [#allocation3], 0
    %7 = vsyncpa [#allocation4], 0
    // Predicated region
    $region2: #{tpu_custom_call.1} parent=1 // pred_check
      _
    $region3: #{tpu_custom_call.1} parent=1 // pred_check_branch
      %9 = sbr.rel (0) target = $region5
    $region4: #{tpu_custom_call.1} parent=1 // pred_region
      %s11 = ssub.s32 128, 128
      %12 = vsyncadd [#allocation3], %s11
      %s14 = sshll.u32 [#allocation2], 4
      %s15 = int_to_ptr.vmem [resolvable:$true] %s14
      %17 = dma.hbm_to_vmem [thread:$0]  %s0, 128, %s15, [#allocation3]
    $region5: #{tpu_custom_call.1} parent=1 // pred_fallthru
      _
    // Predicated region
    $region6: #{tpu_custom_call.1} parent=1 // pred_check
      _
    $region7: #{tpu_custom_call.1} parent=1 // pred_check_branch
      %19 = sbr.rel (0) target = $region9
    $region8: #{tpu_custom_call.1} parent=1 // pred_region
      %20 = dma.done [#allocation3], 128
    $region9: #{tpu_custom_call.1} parent=1 // pred_fallthru
      _
    %v21 = vld [vmem:[#allocation2] sm:$0xff]
    %22 = vrot.lane.b32.xlu0 %v21, 1
    %v23 = vpop.permute.xlu0 %22
    %24 = vst [vmem:[#allocation5] sm:$0xff] %v23
    // Predicated region
    $region10: #{tpu_custom_call.1} parent=1 // pred_check
      _
    $region11: #{tpu_custom_call.1} parent=1 // pred_check_branch
      %26 = sbr.rel (0) target = $region13
    $region12: #{tpu_custom_call.1} parent=1 // pred_region
      %s28 = ssub.s32 128, 128
      %29 = vsyncadd [#allocation4], %s28
      %s31 = sshll.u32 [#allocation5], 4
      %s32 = int_to_ptr.vmem [resolvable:$true] %s31
      %34 = dma.vmem_to_hbm [thread:$0]  %s32, 128, %s1, [#allocation4]
    $region13: #{tpu_custom_call.1} parent=1 // pred_fallthru
      _
    // Predicated region
    $region14: #{tpu_custom_call.1} parent=1 // pred_check
      _
    $region15: #{tpu_custom_call.1} parent=1 // pred_check_branch
      %36 = sbr.rel (0) target = $region17
    $region16: #{tpu_custom_call.1} parent=1 // pred_region
      %37 = dma.done [#allocation4], 128
    $region17: #{tpu_custom_call.1} parent=1 // pred_fallthru
      _
    %38 = vsyncpa [#allocation3], 1
    %39 = vsyncpa [#allocation4], 1

</llo_original>
